<compile_context>
chip_gen: v7x
topology: tpu7x:2x2x1
jax: 0.10.0
libtpu: 0.0.40
codegen_flags: <defaults>
</compile_context>

<pallas_src>
import math

import jax
import jax.numpy as jnp
import numpy as np
from jax.experimental import pallas as pl
from jax.experimental.pallas import tpu as pltpu

D_MODEL = 512          # same as the original module
D_OUT = 2
NEG_SLOPE = 0.01       # LeakyReLU default


# ----------------------------------------------------------------------------
# Fused Pallas kernel: the entire Proposer forward for one batch tile.
# ----------------------------------------------------------------------------
def proposer_kernel(m_ref, w1_ref, b1_ref, gain_ref, bias_ref,
                    w2_ref, b2_ref, expl_ref, o_ref):
    m = m_ref[...]                                           # (TB, D) f32
    D = m.shape[1]

    # fc1 + residual:  x = m @ W1 + b1 + m
    # MXU operands in bf16 (w1_ref is already bf16), f32 accumulation.
    x = jnp.dot(m.astype(jnp.bfloat16), w1_ref[...],
                preferred_element_type=jnp.float32)
    x = x + b1_ref[...] + m

    # Per-row normalization, torch semantics: unbiased std (N-1), no eps.
    # (All of this stays in f32 on the VPU/EUP.)
    mean = jnp.mean(x, axis=1, keepdims=True)
    xc = x - mean
    var = jnp.sum(xc * xc, axis=1, keepdims=True) * (1.0 / (D - 1))
    x = xc * jax.lax.rsqrt(var)                              # == (x - mean) / std

    # (1 + gain) * x + bias, then LeakyReLU
    x = (1.0 + gain_ref[...]) * x + bias_ref[...]
    x = jnp.where(x > 0, x, NEG_SLOPE * x)

    # fc2 + exploration_parameter, then sigmoid (bf16 MXU operands, f32 acc)
    y = jnp.dot(x.astype(jnp.bfloat16), w2_ref[...],
                preferred_element_type=jnp.float32)
    y = y + b2_ref[...] + expl_ref[0, 0]
    o_ref[...] = jax.nn.sigmoid(y)


# ----------------------------------------------------------------------------
# Batch-tile selection: big tiles for amortization, >=2 grid steps for v7x.
# ----------------------------------------------------------------------------
def _round_up(x, m):
    return ((x + m - 1) // m) * m


def _pick_tb(B, tb):
    # v7x has 2 TensorCores: when the batch is large enough, force at least
    # two grid steps along the "parallel" axis, keeping the batch tile a
    # multiple of 256 (full M passes on the 2x256x256 MXU of v6e/v7x; also a
    # multiple of 128 for v5e's 4x128x128 MXU).
    if B > 256:
        tb = min(tb, _round_up(pl.cdiv(B, 2), 256))
    tb = min(tb, _round_up(B, 8))          # never bigger than the padded batch
    return max(tb, 8)                      # >= 8 sublanes


# ----------------------------------------------------------------------------
# Wrapper: one pallas_call, batch-tiled grid, weights resident in VMEM.
# ----------------------------------------------------------------------------
def proposer_forward(market_encoding, params, exploration_parameter=0.0, *, tb=512):
    m = market_encoding.reshape(-1, D_MODEL).astype(jnp.float32)   # torch .view(-1, D_MODEL)
    B, D = m.shape
    d_out = params["w2"].shape[1]
    tb = _pick_tb(B, tb)
    grid = (pl.cdiv(B, tb),)

    # Feed the MXU bf16 weights (halves the weight HBM->VMEM DMA). For a
    # repeatedly-called inference loop, store the bf16 copies persistently
    # (or keep weights resident across calls) instead of casting per call:
    # at tiny batch the 0.5 MiB w1 DMA is the whole latency budget.
    w1 = params["w1"].astype(jnp.bfloat16)
    w2 = params["w2"].astype(jnp.bfloat16)
    expl = jnp.full((1, 1), exploration_parameter, jnp.float32)

    return pl.pallas_call(
        proposer_kernel,
        out_shape=jax.ShapeDtypeStruct((B, d_out), jnp.float32),
        grid_spec=pltpu.PrefetchScalarGridSpec(
            num_scalar_prefetch=0,
            grid=grid,
            in_specs=[
                pl.BlockSpec((tb, D), lambda i: (i, 0)),        # activations tile
                pl.BlockSpec((D, D), lambda i: (0, 0)),         # w1 (bf16, resident)
                pl.BlockSpec((1, D), lambda i: (0, 0)),         # b1
                pl.BlockSpec((1, D), lambda i: (0, 0)),         # fc1_gain
                pl.BlockSpec((1, D), lambda i: (0, 0)),         # fc1_bias
                pl.BlockSpec((D, d_out), lambda i: (0, 0)),     # w2 (bf16, resident)
                pl.BlockSpec((1, d_out), lambda i: (0, 0)),     # b2
                pl.BlockSpec(memory_space=pltpu.MemorySpace.SMEM),  # exploration scalar
            ],
            out_specs=pl.BlockSpec((tb, d_out), lambda i: (i, 0)),
        ),
        compiler_params=pltpu.CompilerParams(
            dimension_semantics=("parallel",)),
    )(m, w1, params["b1"], params["gain"], params["bias"],
      w2, params["b2"], expl)


# ----------------------------------------------------------------------------
# References for correctness checks.
# ----------------------------------------------------------------------------
def proposer_ref_f32(market_encoding, params, exploration_parameter=0.0):
    """Exact torch-semantics reference in full f32 (loose-tolerance check)."""
    m = market_encoding.reshape(-1, D_MODEL)
    x = m @ params["w1"] + params["b1"] + m
    mean = jnp.mean(x, axis=1, keepdims=True)
    std = jnp.std(x, axis=1, keepdims=True, ddof=1)          # torch unbiased std
    x = (x - mean) / std
    x = (1.0 + params["gain"]) * x + params["bias"]
    x = jnp.where(x > 0, x, NEG_SLOPE * x)
    y = x @ params["w2"] + params["b2"] + exploration_parameter
    return jax.nn.sigmoid(y)


def proposer_ref_bf16(market_encoding, params, exploration_parameter=0.0):
    """Same operand casts / normalization path as the kernel (tight check)."""
    m = market_encoding.reshape(-1, D_MODEL).astype(jnp.float32)
    D = m.shape[1]
    x = jnp.dot(m.astype(jnp.bfloat16), params["w1"].astype(jnp.bfloat16),
                preferred_element_type=jnp.float32)
    x = x + params["b1"] + m
    mean = jnp.mean(x, axis=1, keepdims=True)
    xc = x - mean
    var = jnp.sum(xc * xc, axis=1, keepdims=True) * (1.0 / (D - 1))
    x = xc * jax.lax.rsqrt(var)
    x = (1.0 + params["gain"]) * x + params["bias"]
    x = jnp.where(x > 0, x, NEG_SLOPE * x)
    y = jnp.dot(x.astype(jnp.bfloat16), params["w2"].astype(jnp.bfloat16),
                preferred_element_type=jnp.float32)
    y = y + params["b2"] + exploration_parameter
    return jax.nn.sigmoid(y)


# ----------------------------------------------------------------------------
# Deterministic parameter initialization.
# (PyTorch inits fc1_gain / fc1_bias to zeros; we use small random values so
#  the test exercises that path — the forward semantics are unchanged.)
# ----------------------------------------------------------------------------
def init_params(key):
    k1, k2, k3, k4, k5, k6 = jax.random.split(key, 6)

    def lin(kw, kb, fin, fout):
        s = 1.0 / math.sqrt(fin)
        return (jax.random.uniform(kw, (fin, fout), jnp.float32, -s, s),
                jax.random.uniform(kb, (1, fout), jnp.float32, -s, s))

    p = {}
    p["w1"], p["b1"] = lin(k1, k2, D_MODEL, D_MODEL)
    p["w2"], p["b2"] = lin(k3, k4, D_MODEL, D_OUT)
    p["gain"] = 0.1 * jax.random.normal(k5, (1, D_MODEL), jnp.float32)
    p["bias"] = 0.1 * jax.random.normal(k6, (1, D_MODEL), jnp.float32)
    return p


if __name__ == "__main__":
    key = jax.random.PRNGKey(0)
    pkey, xkey = jax.random.split(key)
    params = init_params(pkey)

    BATCH = 8
    market_encoding = jax.random.normal(xkey, (BATCH, D_MODEL), jnp.float32)
    exploration_parameter = 0.1

    out = jax.jit(proposer_forward, static_argnames=("tb",))(
        market_encoding, params, exploration_parameter)
    out = jax.block_until_ready(out)

    assert out.shape == (BATCH, D_OUT), out.shape

    # Tight check against a reference with identical bf16 matmul operands.
    ref_b = jax.block_until_ready(
        proposer_ref_bf16(market_encoding, params, exploration_parameter))
    np.testing.assert_allclose(np.asarray(out), np.asarray(ref_b),
                               rtol=1e-3, atol=1e-3)

    # Loose check against the full-f32 torch-semantics reference (bf16 MXU
    # operands introduce O(1e-3) relative differences before the sigmoid).
    ref_f = jax.block_until_ready(
        proposer_ref_f32(market_encoding, params, exploration_parameter))
    np.testing.assert_allclose(np.asarray(out), np.asarray(ref_f),
                               rtol=2e-2, atol=2e-2)

    print("KERNEL_OK")
</pallas_src>

<mosaic_0001>
module attributes {stable_mosaic.version = 11 : i64} {
  func.func @proposer_kernel(%arg0: i32, %arg1: memref<8x512xf32, #tpu.memory_space<vmem>>, %arg2: memref<512x512xbf16, #tpu.memory_space<vmem>>, %arg3: memref<1x512xf32, #tpu.memory_space<vmem>>, %arg4: memref<1x512xf32, #tpu.memory_space<vmem>>, %arg5: memref<1x512xf32, #tpu.memory_space<vmem>>, %arg6: memref<512x2xbf16, #tpu.memory_space<vmem>>, %arg7: memref<1x2xf32, #tpu.memory_space<vmem>>, %arg8: memref<1x1xf32, #tpu.memory_space<smem>>, %arg9: memref<8x2xf32, #tpu.memory_space<vmem>>) attributes {dimension_semantics = [#tpu.dimension_semantics<parallel>], iteration_bounds = array<i64: 1>, scalar_prefetch = 0 : i64, scratch_operands = 0 : i64, tpu.core_type = #tpu.core_type<tc>, window_params = [{transform_indices = @transform_0, window_bounds = array<i64: 8, 512>}, {pipeline_mode = #tpu.pipeline_mode<synchronous>, transform_indices = @transform_1, window_bounds = array<i64: 512, 512>}, {pipeline_mode = #tpu.pipeline_mode<synchronous>, transform_indices = @transform_2, window_bounds = array<i64: 1, 512>}, {pipeline_mode = #tpu.pipeline_mode<synchronous>, transform_indices = @transform_3, window_bounds = array<i64: 1, 512>}, {pipeline_mode = #tpu.pipeline_mode<synchronous>, transform_indices = @transform_4, window_bounds = array<i64: 1, 512>}, {pipeline_mode = #tpu.pipeline_mode<synchronous>, transform_indices = @transform_5, window_bounds = array<i64: 512, 2>}, {pipeline_mode = #tpu.pipeline_mode<synchronous>, transform_indices = @transform_6, window_bounds = array<i64: 1, 2>}, {transform_indices = @transform_7, window_bounds = array<i64: 1, 1>}, {transform_indices = @transform_8, window_bounds = array<i64: 8, 2>}]} {
    %c0 = arith.constant 0 : index
    %c0_0 = arith.constant 0 : index
    %0 = vector.load %arg1[%c0, %c0_0] : memref<8x512xf32, #tpu.memory_space<vmem>>, vector<8x512xf32>
    %1 = arith.truncf %0 : vector<8x512xf32> to vector<8x512xbf16>
    %c0_1 = arith.constant 0 : index
    %c0_2 = arith.constant 0 : index
    %2 = vector.load %arg2[%c0_1, %c0_2] : memref<512x512xbf16, #tpu.memory_space<vmem>>, vector<512x512xbf16>
    %cst = arith.constant dense<0.000000e+00> : vector<8x512xf32>
    %3 = tpu.matmul %1, %2, %cst {dimension_numbers = #tpu.dot_dimension_numbers<[1], [0], [0], [1], [0, 0, 1, 1], [], []>} : vector<8x512xbf16>, vector<512x512xbf16>, vector<8x512xf32> -> vector<8x512xf32>
    %c0_3 = arith.constant 0 : index
    %c0_4 = arith.constant 0 : index
    %4 = vector.load %arg3[%c0_3, %c0_4] : memref<1x512xf32, #tpu.memory_space<vmem>>, vector<1x512xf32>
    %5 = vector.broadcast %4 : vector<1x512xf32> to vector<8x512xf32>
    %6 = arith.addf %3, %5 : vector<8x512xf32>
    %7 = arith.addf %6, %0 : vector<8x512xf32>
    %cst_5 = arith.constant dense<0.000000e+00> : vector<8xf32>
    %8 = vector.multi_reduction <add>, %7, %cst_5 [1] : vector<8x512xf32> to vector<8xf32>
    %9 = vector.shape_cast %8 : vector<8xf32> to vector<8x1xf32>
    %cst_6 = arith.constant 5.120000e+02 : f32
    %10 = vector.broadcast %cst_6 : f32 to vector<8x1xf32>
    %11 = arith.divf %9, %10 : vector<8x1xf32>
    %12 = vector.broadcast %11 : vector<8x1xf32> to vector<8x512xf32>
    %13 = arith.subf %7, %12 : vector<8x512xf32>
    %14 = arith.mulf %13, %13 : vector<8x512xf32>
    %cst_7 = arith.constant dense<0.000000e+00> : vector<8xf32>
    %15 = vector.multi_reduction <add>, %14, %cst_7 [1] : vector<8x512xf32> to vector<8xf32>
    %16 = vector.shape_cast %15 : vector<8xf32> to vector<8x1xf32>
    %cst_8 = arith.constant 0.00195694715 : f32
    %17 = vector.broadcast %cst_8 : f32 to vector<8x1xf32>
    %18 = arith.mulf %16, %17 : vector<8x1xf32>
    %19 = math.rsqrt %18 : vector<8x1xf32>
    %20 = vector.broadcast %19 : vector<8x1xf32> to vector<8x512xf32>
    %21 = arith.mulf %13, %20 : vector<8x512xf32>
    %c0_9 = arith.constant 0 : index
    %c0_10 = arith.constant 0 : index
    %22 = vector.load %arg4[%c0_9, %c0_10] : memref<1x512xf32, #tpu.memory_space<vmem>>, vector<1x512xf32>
    %cst_11 = arith.constant 1.000000e+00 : f32
    %23 = vector.broadcast %cst_11 : f32 to vector<1x512xf32>
    %24 = arith.addf %23, %22 : vector<1x512xf32>
    %25 = vector.broadcast %24 : vector<1x512xf32> to vector<8x512xf32>
    %26 = arith.mulf %25, %21 : vector<8x512xf32>
    %c0_12 = arith.constant 0 : index
    %c0_13 = arith.constant 0 : index
    %27 = vector.load %arg5[%c0_12, %c0_13] : memref<1x512xf32, #tpu.memory_space<vmem>>, vector<1x512xf32>
    %28 = vector.broadcast %27 : vector<1x512xf32> to vector<8x512xf32>
    %29 = arith.addf %26, %28 : vector<8x512xf32>
    %cst_14 = arith.constant 0.000000e+00 : f32
    %30 = vector.broadcast %cst_14 : f32 to vector<8x512xf32>
    %31 = arith.cmpf ogt, %29, %30 : vector<8x512xf32>
    %cst_15 = arith.constant 0.00999999977 : f32
    %32 = vector.broadcast %cst_15 : f32 to vector<8x512xf32>
    %33 = arith.mulf %32, %29 : vector<8x512xf32>
    %34 = arith.select %31, %29, %33 : vector<8x512xi1>, vector<8x512xf32>
    %35 = arith.truncf %34 : vector<8x512xf32> to vector<8x512xbf16>
    %c0_16 = arith.constant 0 : index
    %c0_17 = arith.constant 0 : index
    %36 = vector.load %arg6[%c0_16, %c0_17] : memref<512x2xbf16, #tpu.memory_space<vmem>>, vector<512x2xbf16>
    %cst_18 = arith.constant dense<0.000000e+00> : vector<8x2xf32>
    %37 = tpu.matmul %35, %36, %cst_18 {dimension_numbers = #tpu.dot_dimension_numbers<[1], [0], [0], [1], [0, 0, 1, 1], [], []>} : vector<8x512xbf16>, vector<512x2xbf16>, vector<8x2xf32> -> vector<8x2xf32>
    %c0_19 = arith.constant 0 : index
    %c0_20 = arith.constant 0 : index
    %38 = vector.load %arg7[%c0_19, %c0_20] : memref<1x2xf32, #tpu.memory_space<vmem>>, vector<1x2xf32>
    %39 = vector.broadcast %38 : vector<1x2xf32> to vector<8x2xf32>
    %40 = arith.addf %37, %39 : vector<8x2xf32>
    %c0_21 = arith.constant 0 : index
    %c0_22 = arith.constant 0 : index
    %41 = memref.load %arg8[%c0_21, %c0_22] : memref<1x1xf32, #tpu.memory_space<smem>>
    %42 = vector.broadcast %41 : f32 to vector<8x2xf32>
    %43 = arith.addf %40, %42 : vector<8x2xf32>
    %44 = arith.negf %43 : vector<8x2xf32>
    %45 = math.exp %44 : vector<8x2xf32>
    %cst_23 = arith.constant 1.000000e+00 : f32
    %46 = vector.broadcast %cst_23 : f32 to vector<8x2xf32>
    %47 = arith.addf %46, %45 : vector<8x2xf32>
    %48 = arith.divf %46, %47 : vector<8x2xf32>
    %c0_24 = arith.constant 0 : index
    %c0_25 = arith.constant 0 : index
    %49 = vector.load %arg9[%c0_24, %c0_25] : memref<8x2xf32, #tpu.memory_space<vmem>>, vector<8x2xf32>
    tpu.vector_store %arg9[%c0_24, %c0_25], %48 {strides = array<i32>} : memref<8x2xf32, #tpu.memory_space<vmem>>, vector<8x2xf32>,
    return
  }
  func.func @transform_0(%arg0: i32) -> (i32, i32) {
    %c0_i32 = arith.constant 0 : i32
    %c0_i32_0 = arith.constant 0 : i32
    return %arg0, %c0_i32 : i32, i32
  }
  func.func @transform_1(%arg0: i32) -> (i32, i32) {
    %c0_i32 = arith.constant 0 : i32
    %c0_i32_0 = arith.constant 0 : i32
    %c0_i32_1 = arith.constant 0 : i32
    return %c0_i32, %c0_i32_0 : i32, i32
  }
  func.func @transform_2(%arg0: i32) -> (i32, i32) {
    %c0_i32 = arith.constant 0 : i32
    %c0_i32_0 = arith.constant 0 : i32
    %c0_i32_1 = arith.constant 0 : i32
    return %c0_i32, %c0_i32_0 : i32, i32
  }
  func.func @transform_3(%arg0: i32) -> (i32, i32) {
    %c0_i32 = arith.constant 0 : i32
    %c0_i32_0 = arith.constant 0 : i32
    %c0_i32_1 = arith.constant 0 : i32
    return %c0_i32, %c0_i32_0 : i32, i32
  }
  func.func @transform_4(%arg0: i32) -> (i32, i32) {
    %c0_i32 = arith.constant 0 : i32
    %c0_i32_0 = arith.constant 0 : i32
    %c0_i32_1 = arith.constant 0 : i32
    return %c0_i32, %c0_i32_0 : i32, i32
  }
  func.func @transform_5(%arg0: i32) -> (i32, i32) {
    %c0_i32 = arith.constant 0 : i32
    %c0_i32_0 = arith.constant 0 : i32
    %c0_i32_1 = arith.constant 0 : i32
    return %c0_i32, %c0_i32_0 : i32, i32
  }
  func.func @transform_6(%arg0: i32) -> (i32, i32) {
    %c0_i32 = arith.constant 0 : i32
    %c0_i32_0 = arith.constant 0 : i32
    %c0_i32_1 = arith.constant 0 : i32
    return %c0_i32, %c0_i32_0 : i32, i32
  }
  func.func @transform_7(%arg0: i32) -> (i32, i32) {
    %c0_i32 = arith.constant 0 : i32
    %c0_i32_0 = arith.constant 0 : i32
    %c0_i32_1 = arith.constant 0 : i32
    return %c0_i32, %c0_i32_0 : i32, i32
  }
  func.func @transform_8(%arg0: i32) -> (i32, i32) {
    %c0_i32 = arith.constant 0 : i32
    %c0_i32_0 = arith.constant 0 : i32
    return %arg0, %c0_i32 : i32, i32
  }
}

</mosaic_0001>

<llo_original>
// kernel: proposer_forward.1
$region0: #{proposer_forward.1}
  #allocation0 [shape = 'u32[]', space=smem, size = 0x4, offset = 0x4, fixed_abs, tag = 'smem constant byte address 0x4 - core index']
  #allocation1 [shape = 'u32[144,128]{1,0:T(1,128)}', space=vmem, size = 0x12000, scoped, tag = 'internal scratch']
  #allocation2 [shape = 'f32[1,1]{1,0:T(1,128)S(6)}', space=smem, size = 0x200, scoped, tag = 'scoped memory for proposer_forward.1']
  %s0 = inlined_call_operand.vmem [shape: f32[8,512], index: 0, kind: input, shape index: {}]
  %s1 = inlined_call_operand.vmem [shape: bf16[512,512], index: 1, kind: input, shape index: {}]
  %s2 = inlined_call_operand.vmem [shape: f32[1,512], index: 2, kind: input, shape index: {}]
  %s3 = inlined_call_operand.vmem [shape: f32[1,512], index: 3, kind: input, shape index: {}]
  %s4 = inlined_call_operand.vmem [shape: f32[1,512], index: 4, kind: input, shape index: {}]
  %s5 = inlined_call_operand.vmem [shape: bf16[512,2], index: 5, kind: input, shape index: {}]
  %s6 = inlined_call_operand.vmem [shape: f32[1,2], index: 6, kind: input, shape index: {}]
  %s7 = inlined_call_operand.<no memory space> [shape: f32[1,1], index: 7, kind: input, shape index: {}]
  %s8 = inlined_call_operand.vmem [shape: f32[8,2], index: 8, kind: output, shape index: {}]
  %s9 = sld [smem:[#allocation0]]
  $region42: #{proposer_forward.1} parent=0
    _
  %s11 = ssub.s32 1, %s9
  %s12 = scalar_select 0, %s11, %s9
  %13 = sst [smem:[#allocation2]] %s7
  // Predicated region
  $region2: #{proposer_forward.1} parent=0 // pred_check
    _
  $region3: #{proposer_forward.1} parent=0 // pred_check_branch
    %15 = sbr.rel (0) target = $region5
  $region4: #{proposer_forward.1} parent=0 // pred_region
    _
  $region5: #{proposer_forward.1} parent=0 // pred_fallthru
    _
  // Predicated region
  $region6: #{proposer_forward.1} parent=0 // pred_check
    _
  $region7: #{proposer_forward.1} parent=0 // pred_check_branch
    %17 = sbr.rel (0) target = $region9
  $region8: #{proposer_forward.1} parent=0 // pred_region
    _
  $region9: #{proposer_forward.1} parent=0 // pred_fallthru
    _
  // Predicated region
  $region10: #{proposer_forward.1} parent=0 // pred_check
    _
  $region11: #{proposer_forward.1} parent=0 // pred_check_branch
    %19 = sbr.rel (0) target = $region13
  $region12: #{proposer_forward.1} parent=0 // pred_region
    _
  $region13: #{proposer_forward.1} parent=0 // pred_fallthru
    _
  // Predicated region
  $region14: #{proposer_forward.1} parent=0 // pred_check
    _
  $region15: #{proposer_forward.1} parent=0 // pred_check_branch
    %21 = sbr.rel (0) target = $region17
  $region16: #{proposer_forward.1} parent=0 // pred_region
    _
  $region17: #{proposer_forward.1} parent=0 // pred_fallthru
    _
  // Predicated region
  $region18: #{proposer_forward.1} parent=0 // pred_check
    _
  $region19: #{proposer_forward.1} parent=0 // pred_check_branch
    %23 = sbr.rel (0) target = $region21
  $region20: #{proposer_forward.1} parent=0 // pred_region
    _
  $region21: #{proposer_forward.1} parent=0 // pred_fallthru
    _
  // Predicated region
  $region22: #{proposer_forward.1} parent=0 // pred_check
    _
  $region23: #{proposer_forward.1} parent=0 // pred_check_branch
    %25 = sbr.rel (0) target = $region25
  $region24: #{proposer_forward.1} parent=0 // pred_region
    _
  $region25: #{proposer_forward.1} parent=0 // pred_fallthru
    _
  // Predicated region
  $region26: #{proposer_forward.1} parent=0 // pred_check
    _
  $region27: #{proposer_forward.1} parent=0 // pred_check_branch
    %27 = sbr.rel (0) target = $region29
  $region28: #{proposer_forward.1} parent=0 // pred_region
    _
  $region29: #{proposer_forward.1} parent=0 // pred_fallthru
    _
  // Predicated region
  $region30: #{proposer_forward.1} parent=0 // pred_check
    _
  $region31: #{proposer_forward.1} parent=0 // pred_check_branch
    %29 = sbr.rel (0) target = $region33
  $region32: #{proposer_forward.1} parent=0 // pred_region
    _
  $region33: #{proposer_forward.1} parent=0 // pred_fallthru
    _
  %v31 = vld [vmem:[%s0] sm:$0xff]
  %v32 = vld [vmem:[%s0 + $0x8] sm:$0xff]
  %v33 = vld [vmem:[%s0 + $0x10] sm:$0xff]
  %v34 = vld [vmem:[%s0 + $0x18] sm:$0xff]
  %v35 = vpack.c.bf16 %v31, %v31
  %v36 = vpack.c.bf16 %v32, %v32
  %v37 = vpack.c.bf16 %v33, %v33
  %v38 = vpack.c.bf16 %v34, %v34
  %v39 = vld [vmem:[%s1] sm:$0xff]
  %v40 = vld [vmem:[%s1 + $0x8] sm:$0xff]
  %v41 = vld [vmem:[%s1 + $0x10] sm:$0xff]
  %v42 = vld [vmem:[%s1 + $0x18] sm:$0xff]
  %v43 = vld [vmem:[%s1 + $0x20] sm:$0xff]
  %v44 = vld [vmem:[%s1 + $0x28] sm:$0xff]
  %v45 = vld [vmem:[%s1 + $0x30] sm:$0xff]
  %v46 = vld [vmem:[%s1 + $0x38] sm:$0xff]
  %v47 = vld [vmem:[%s1 + $0x40] sm:$0xff]
  %v48 = vld [vmem:[%s1 + $0x48] sm:$0xff]
  %v49 = vld [vmem:[%s1 + $0x50] sm:$0xff]
  %v50 = vld [vmem:[%s1 + $0x58] sm:$0xff]
  %v51 = vld [vmem:[%s1 + $0x60] sm:$0xff]
  %v52 = vld [vmem:[%s1 + $0x68] sm:$0xff]
  %v53 = vld [vmem:[%s1 + $0x70] sm:$0xff]
  %v54 = vld [vmem:[%s1 + $0x78] sm:$0xff]
  %v55 = vld [vmem:[%s1 + $0x80] sm:$0xff]
  %v56 = vld [vmem:[%s1 + $0x88] sm:$0xff]
  %v57 = vld [vmem:[%s1 + $0x90] sm:$0xff]
  %v58 = vld [vmem:[%s1 + $0x98] sm:$0xff]
  %v59 = vld [vmem:[%s1 + $0xa0] sm:$0xff]
  %v60 = vld [vmem:[%s1 + $0xa8] sm:$0xff]
  %v61 = vld [vmem:[%s1 + $0xb0] sm:$0xff]
  %v62 = vld [vmem:[%s1 + $0xb8] sm:$0xff]
  %v63 = vld [vmem:[%s1 + $0xc0] sm:$0xff]
  %v64 = vld [vmem:[%s1 + $0xc8] sm:$0xff]
  %v65 = vld [vmem:[%s1 + $0xd0] sm:$0xff]
  %v66 = vld [vmem:[%s1 + $0xd8] sm:$0xff]
  %v67 = vld [vmem:[%s1 + $0xe0] sm:$0xff]
  %v68 = vld [vmem:[%s1 + $0xe8] sm:$0xff]
  %v69 = vld [vmem:[%s1 + $0xf0] sm:$0xff]
  %v70 = vld [vmem:[%s1 + $0xf8] sm:$0xff]
  %v71 = vld [vmem:[%s1 + $0x100] sm:$0xff]
  %v72 = vld [vmem:[%s1 + $0x108] sm:$0xff]
  %v73 = vld [vmem:[%s1 + $0x110] sm:$0xff]
  %v74 = vld [vmem:[%s1 + $0x118] sm:$0xff]
  %v75 = vld [vmem:[%s1 + $0x120] sm:$0xff]
  %v76 = vld [vmem:[%s1 + $0x128] sm:$0xff]
  %v77 = vld [vmem:[%s1 + $0x130] sm:$0xff]
  %v78 = vld [vmem:[%s1 + $0x138] sm:$0xff]
  %v79 = vld [vmem:[%s1 + $0x140] sm:$0xff]
  %v80 = vld [vmem:[%s1 + $0x148] sm:$0xff]
  %v81 = vld [vmem:[%s1 + $0x150] sm:$0xff]
  %v82 = vld [vmem:[%s1 + $0x158] sm:$0xff]
  %v83 = vld [vmem:[%s1 + $0x160] sm:$0xff]
  %v84 = vld [vmem:[%s1 + $0x168] sm:$0xff]
  %v85 = vld [vmem:[%s1 + $0x170] sm:$0xff]
  %v86 = vld [vmem:[%s1 + $0x178] sm:$0xff]
  %v87 = vld [vmem:[%s1 + $0x180] sm:$0xff]
  %v88 = vld [vmem:[%s1 + $0x188] sm:$0xff]
  %v89 = vld [vmem:[%s1 + $0x190] sm:$0xff]
  %v90 = vld [vmem:[%s1 + $0x198] sm:$0xff]
  %v91 = vld [vmem:[%s1 + $0x1a0] sm:$0xff]
  %v92 = vld [vmem:[%s1 + $0x1a8] sm:$0xff]
  %v93 = vld [vmem:[%s1 + $0x1b0] sm:$0xff]
  %v94 = vld [vmem:[%s1 + $0x1b8] sm:$0xff]
  %v95 = vld [vmem:[%s1 + $0x1c0] sm:$0xff]
  %v96 = vld [vmem:[%s1 + $0x1c8] sm:$0xff]
  %v97 = vld [vmem:[%s1 + $0x1d0] sm:$0xff]
  %v98 = vld [vmem:[%s1 + $0x1d8] sm:$0xff]
  %v99 = vld [vmem:[%s1 + $0x1e0] sm:$0xff]
  %v100 = vld [vmem:[%s1 + $0x1e8] sm:$0xff]
  %v101 = vld [vmem:[%s1 + $0x1f0] sm:$0xff]
  %v102 = vld [vmem:[%s1 + $0x1f8] sm:$0xff]
  %v103 = vld [vmem:[%s1 + $0x200] sm:$0xff]
  %v104 = vld [vmem:[%s1 + $0x208] sm:$0xff]
  %v105 = vld [vmem:[%s1 + $0x210] sm:$0xff]
  %v106 = vld [vmem:[%s1 + $0x218] sm:$0xff]
  %v107 = vld [vmem:[%s1 + $0x220] sm:$0xff]
  %v108 = vld [vmem:[%s1 + $0x228] sm:$0xff]
  %v109 = vld [vmem:[%s1 + $0x230] sm:$0xff]
  %v110 = vld [vmem:[%s1 + $0x238] sm:$0xff]
  %v111 = vld [vmem:[%s1 + $0x240] sm:$0xff]
  %v112 = vld [vmem:[%s1 + $0x248] sm:$0xff]
  %v113 = vld [vmem:[%s1 + $0x250] sm:$0xff]
  %v114 = vld [vmem:[%s1 + $0x258] sm:$0xff]
  %v115 = vld [vmem:[%s1 + $0x260] sm:$0xff]
  %v116 = vld [vmem:[%s1 + $0x268] sm:$0xff]
  %v117 = vld [vmem:[%s1 + $0x270] sm:$0xff]
  %v118 = vld [vmem:[%s1 + $0x278] sm:$0xff]
  %v119 = vld [vmem:[%s1 + $0x280] sm:$0xff]
  %v120 = vld [vmem:[%s1 + $0x288] sm:$0xff]
  %v121 = vld [vmem:[%s1 + $0x290] sm:$0xff]
  %v122 = vld [vmem:[%s1 + $0x298] sm:$0xff]
  %v123 = vld [vmem:[%s1 + $0x2a0] sm:$0xff]
  %v124 = vld [vmem:[%s1 + $0x2a8] sm:$0xff]
  %v125 = vld [vmem:[%s1 + $0x2b0] sm:$0xff]
  %v126 = vld [vmem:[%s1 + $0x2b8] sm:$0xff]
  %v127 = vld [vmem:[%s1 + $0x2c0] sm:$0xff]
  %v128 = vld [vmem:[%s1 + $0x2c8] sm:$0xff]
  %v129 = vld [vmem:[%s1 + $0x2d0] sm:$0xff]
  %v130 = vld [vmem:[%s1 + $0x2d8] sm:$0xff]
  %v131 = vld [vmem:[%s1 + $0x2e0] sm:$0xff]
  %v132 = vld [vmem:[%s1 + $0x2e8] sm:$0xff]
  %v133 = vld [vmem:[%s1 + $0x2f0] sm:$0xff]
  %v134 = vld [vmem:[%s1 + $0x2f8] sm:$0xff]
  %v135 = vld [vmem:[%s1 + $0x300] sm:$0xff]
  %v136 = vld [vmem:[%s1 + $0x308] sm:$0xff]
  %v137 = vld [vmem:[%s1 + $0x310] sm:$0xff]
  %v138 = vld [vmem:[%s1 + $0x318] sm:$0xff]
  %v139 = vld [vmem:[%s1 + $0x320] sm:$0xff]
  %v140 = vld [vmem:[%s1 + $0x328] sm:$0xff]
  %v141 = vld [vmem:[%s1 + $0x330] sm:$0xff]
  %v142 = vld [vmem:[%s1 + $0x338] sm:$0xff]
  %v143 = vld [vmem:[%s1 + $0x340] sm:$0xff]
  %v144 = vld [vmem:[%s1 + $0x348] sm:$0xff]
  %v145 = vld [vmem:[%s1 + $0x350] sm:$0xff]
  %v146 = vld [vmem:[%s1 + $0x358] sm:$0xff]
  %v147 = vld [vmem:[%s1 + $0x360] sm:$0xff]
  %v148 = vld [vmem:[%s1 + $0x368] sm:$0xff]
  %v149 = vld [vmem:[%s1 + $0x370] sm:$0xff]
  %v150 = vld [vmem:[%s1 + $0x378] sm:$0xff]
  %v151 = vld [vmem:[%s1 + $0x380] sm:$0xff]
  %v152 = vld [vmem:[%s1 + $0x388] sm:$0xff]
  %v153 = vld [vmem:[%s1 + $0x390] sm:$0xff]
  %v154 = vld [vmem:[%s1 + $0x398] sm:$0xff]
  %v155 = vld [vmem:[%s1 + $0x3a0] sm:$0xff]
  %v156 = vld [vmem:[%s1 + $0x3a8] sm:$0xff]
  %v157 = vld [vmem:[%s1 + $0x3b0] sm:$0xff]
  %v158 = vld [vmem:[%s1 + $0x3b8] sm:$0xff]
  %v159 = vld [vmem:[%s1 + $0x3c0] sm:$0xff]
  %v160 = vld [vmem:[%s1 + $0x3c8] sm:$0xff]
  %v161 = vld [vmem:[%s1 + $0x3d0] sm:$0xff]
  %v162 = vld [vmem:[%s1 + $0x3d8] sm:$0xff]
  %v163 = vld [vmem:[%s1 + $0x3e0] sm:$0xff]
  %v164 = vld [vmem:[%s1 + $0x3e8] sm:$0xff]
  %v165 = vld [vmem:[%s1 + $0x3f0] sm:$0xff]
  %v166 = vld [vmem:[%s1 + $0x3f8] sm:$0xff]
  %v167 = vld [vmem:[%s2] sm:$0xf]
  %v169 = vlaneseq
  %v170 = vshrl.u32 %v169, 7
  %v171 = vsub.s32 0, %v170
  %v172 = vrot.slane %v167, %v171
  %v173 = vlaneseq
  %v174 = vshrl.u32 %v173, 7
  %v175 = vsub.s32 1, %v174
  %v176 = vrot.slane %v167, %v175
  %v177 = vlaneseq
  %v178 = vshrl.u32 %v177, 7
  %v179 = vsub.s32 2, %v178
  %v180 = vrot.slane %v167, %v179
  %v181 = vlaneseq
  %v182 = vshrl.u32 %v181, 7
  %v183 = vsub.s32 3, %v182
  %v184 = vrot.slane %v167, %v183
  %v317 = vunpack.c.l.b16 %v39
  %v318 = vunpack.c.h.b16 %v39
  %v319 = vunpack.c.l.b16 %v40
  %v320 = vunpack.c.h.b16 %v40
  %v321 = vunpack.c.l.b16 %v41
  %v322 = vunpack.c.h.b16 %v41
  %v323 = vunpack.c.l.b16 %v42
  %v324 = vunpack.c.h.b16 %v42
  %v325 = vunpack.c.l.b16 %v43
  %v326 = vunpack.c.h.b16 %v43
  %v327 = vunpack.c.l.b16 %v44
  %v328 = vunpack.c.h.b16 %v44
  %v329 = vunpack.c.l.b16 %v45
  %v330 = vunpack.c.h.b16 %v45
  %v331 = vunpack.c.l.b16 %v46
  %v332 = vunpack.c.h.b16 %v46
  %v333 = vunpack.c.l.b16 %v47
  %v334 = vunpack.c.h.b16 %v47
  %v335 = vunpack.c.l.b16 %v48
  %v336 = vunpack.c.h.b16 %v48
  %v337 = vunpack.c.l.b16 %v49
  %v338 = vunpack.c.h.b16 %v49
  %v339 = vunpack.c.l.b16 %v50
  %v340 = vunpack.c.h.b16 %v50
  %v341 = vunpack.c.l.b16 %v51
  %v342 = vunpack.c.h.b16 %v51
  %v343 = vunpack.c.l.b16 %v52
  %v344 = vunpack.c.h.b16 %v52
  %v345 = vunpack.c.l.b16 %v53
  %v346 = vunpack.c.h.b16 %v53
  %v347 = vunpack.c.l.b16 %v54
  %v348 = vunpack.c.h.b16 %v54
  %v349 = vunpack.c.l.b16 %v55
  %v350 = vunpack.c.h.b16 %v55
  %v351 = vunpack.c.l.b16 %v56
  %v352 = vunpack.c.h.b16 %v56
  %v353 = vunpack.c.l.b16 %v57
  %v354 = vunpack.c.h.b16 %v57
  %v355 = vunpack.c.l.b16 %v58
  %v356 = vunpack.c.h.b16 %v58
  %v357 = vunpack.c.l.b16 %v59
  %v358 = vunpack.c.h.b16 %v59
  %v359 = vunpack.c.l.b16 %v60
  %v360 = vunpack.c.h.b16 %v60
  %v361 = vunpack.c.l.b16 %v61
  %v362 = vunpack.c.h.b16 %v61
  %v363 = vunpack.c.l.b16 %v62
  %v364 = vunpack.c.h.b16 %v62
  %v365 = vunpack.c.l.b16 %v63
  %v366 = vunpack.c.h.b16 %v63
  %v367 = vunpack.c.l.b16 %v64
  %v368 = vunpack.c.h.b16 %v64
  %v369 = vunpack.c.l.b16 %v65
  %v370 = vunpack.c.h.b16 %v65
  %v371 = vunpack.c.l.b16 %v66
  %v372 = vunpack.c.h.b16 %v66
  %v373 = vunpack.c.l.b16 %v67
  %v374 = vunpack.c.h.b16 %v67
  %v375 = vunpack.c.l.b16 %v68
  %v376 = vunpack.c.h.b16 %v68
  %v377 = vunpack.c.l.b16 %v69
  %v378 = vunpack.c.h.b16 %v69
  %v379 = vunpack.c.l.b16 %v70
  %v380 = vunpack.c.h.b16 %v70
  %v381 = vunpack.c.l.b16 %v71
  %v382 = vunpack.c.h.b16 %v71
  %v383 = vunpack.c.l.b16 %v72
  %v384 = vunpack.c.h.b16 %v72
  %v385 = vunpack.c.l.b16 %v73
  %v386 = vunpack.c.h.b16 %v73
  %v387 = vunpack.c.l.b16 %v74
  %v388 = vunpack.c.h.b16 %v74
  %v389 = vunpack.c.l.b16 %v75
  %v390 = vunpack.c.h.b16 %v75
  %v391 = vunpack.c.l.b16 %v76
  %v392 = vunpack.c.h.b16 %v76
  %v393 = vunpack.c.l.b16 %v77
  %v394 = vunpack.c.h.b16 %v77
  %v395 = vunpack.c.l.b16 %v78
  %v396 = vunpack.c.h.b16 %v78
  %v397 = vunpack.c.l.b16 %v79
  %v398 = vunpack.c.h.b16 %v79
  %v399 = vunpack.c.l.b16 %v80
  %v400 = vunpack.c.h.b16 %v80
  %v401 = vunpack.c.l.b16 %v81
  %v402 = vunpack.c.h.b16 %v81
  %v403 = vunpack.c.l.b16 %v82
  %v404 = vunpack.c.h.b16 %v82
  %v405 = vunpack.c.l.b16 %v83
  %v406 = vunpack.c.h.b16 %v83
  %v407 = vunpack.c.l.b16 %v84
  %v408 = vunpack.c.h.b16 %v84
  %v409 = vunpack.c.l.b16 %v85
  %v410 = vunpack.c.h.b16 %v85
  %v411 = vunpack.c.l.b16 %v86
  %v412 = vunpack.c.h.b16 %v86
  %v413 = vunpack.c.l.b16 %v87
  %v414 = vunpack.c.h.b16 %v87
  %v415 = vunpack.c.l.b16 %v88
  %v416 = vunpack.c.h.b16 %v88
  %v417 = vunpack.c.l.b16 %v89
  %v418 = vunpack.c.h.b16 %v89
  %v419 = vunpack.c.l.b16 %v90
  %v420 = vunpack.c.h.b16 %v90
  %v421 = vunpack.c.l.b16 %v91
  %v422 = vunpack.c.h.b16 %v91
  %v423 = vunpack.c.l.b16 %v92
  %v424 = vunpack.c.h.b16 %v92
  %v425 = vunpack.c.l.b16 %v93
  %v426 = vunpack.c.h.b16 %v93
  %v427 = vunpack.c.l.b16 %v94
  %v428 = vunpack.c.h.b16 %v94
  %v429 = vunpack.c.l.b16 %v95
  %v430 = vunpack.c.h.b16 %v95
  %v431 = vunpack.c.l.b16 %v96
  %v432 = vunpack.c.h.b16 %v96
  %v433 = vunpack.c.l.b16 %v97
  %v434 = vunpack.c.h.b16 %v97
  %v435 = vunpack.c.l.b16 %v98
  %v436 = vunpack.c.h.b16 %v98
  %v437 = vunpack.c.l.b16 %v99
  %v438 = vunpack.c.h.b16 %v99
  %v439 = vunpack.c.l.b16 %v100
  %v440 = vunpack.c.h.b16 %v100
  %v441 = vunpack.c.l.b16 %v101
  %v442 = vunpack.c.h.b16 %v101
  %v443 = vunpack.c.l.b16 %v102
  %v444 = vunpack.c.h.b16 %v102
  %v445 = vunpack.c.l.b16 %v103
  %v446 = vunpack.c.h.b16 %v103
  %v447 = vunpack.c.l.b16 %v104
  %v448 = vunpack.c.h.b16 %v104
  %v449 = vunpack.c.l.b16 %v105
  %v450 = vunpack.c.h.b16 %v105
  %v451 = vunpack.c.l.b16 %v106
  %v452 = vunpack.c.h.b16 %v106
  %v453 = vunpack.c.l.b16 %v107
  %v454 = vunpack.c.h.b16 %v107
  %v455 = vunpack.c.l.b16 %v108
  %v456 = vunpack.c.h.b16 %v108
  %v457 = vunpack.c.l.b16 %v109
  %v458 = vunpack.c.h.b16 %v109
  %v459 = vunpack.c.l.b16 %v110
  %v460 = vunpack.c.h.b16 %v110
  %v461 = vunpack.c.l.b16 %v111
  %v462 = vunpack.c.h.b16 %v111
  %v463 = vunpack.c.l.b16 %v112
  %v464 = vunpack.c.h.b16 %v112
  %v465 = vunpack.c.l.b16 %v113
  %v466 = vunpack.c.h.b16 %v113
  %v467 = vunpack.c.l.b16 %v114
  %v468 = vunpack.c.h.b16 %v114
  %v469 = vunpack.c.l.b16 %v115
  %v470 = vunpack.c.h.b16 %v115
  %v471 = vunpack.c.l.b16 %v116
  %v472 = vunpack.c.h.b16 %v116
  %v473 = vunpack.c.l.b16 %v117
  %v474 = vunpack.c.h.b16 %v117
  %v475 = vunpack.c.l.b16 %v118
  %v476 = vunpack.c.h.b16 %v118
  %v477 = vunpack.c.l.b16 %v119
  %v478 = vunpack.c.h.b16 %v119
  %v479 = vunpack.c.l.b16 %v120
  %v480 = vunpack.c.h.b16 %v120
  %v481 = vunpack.c.l.b16 %v121
  %v482 = vunpack.c.h.b16 %v121
  %v483 = vunpack.c.l.b16 %v122
  %v484 = vunpack.c.h.b16 %v122
  %v485 = vunpack.c.l.b16 %v123
  %v486 = vunpack.c.h.b16 %v123
  %v487 = vunpack.c.l.b16 %v124
  %v488 = vunpack.c.h.b16 %v124
  %v489 = vunpack.c.l.b16 %v125
  %v490 = vunpack.c.h.b16 %v125
  %v491 = vunpack.c.l.b16 %v126
  %v492 = vunpack.c.h.b16 %v126
  %v493 = vunpack.c.l.b16 %v127
  %v494 = vunpack.c.h.b16 %v127
  %v495 = vunpack.c.l.b16 %v128
  %v496 = vunpack.c.h.b16 %v128
  %v497 = vunpack.c.l.b16 %v129
  %v498 = vunpack.c.h.b16 %v129
  %v499 = vunpack.c.l.b16 %v130
  %v500 = vunpack.c.h.b16 %v130
  %v501 = vunpack.c.l.b16 %v131
  %v502 = vunpack.c.h.b16 %v131
  %v503 = vunpack.c.l.b16 %v132
  %v504 = vunpack.c.h.b16 %v132
  %v505 = vunpack.c.l.b16 %v133
  %v506 = vunpack.c.h.b16 %v133
  %v507 = vunpack.c.l.b16 %v134
  %v508 = vunpack.c.h.b16 %v134
  %v509 = vunpack.c.l.b16 %v135
  %v510 = vunpack.c.h.b16 %v135
  %v511 = vunpack.c.l.b16 %v136
  %v512 = vunpack.c.h.b16 %v136
  %v513 = vunpack.c.l.b16 %v137
  %v514 = vunpack.c.h.b16 %v137
  %v515 = vunpack.c.l.b16 %v138
  %v516 = vunpack.c.h.b16 %v138
  %v517 = vunpack.c.l.b16 %v139
  %v518 = vunpack.c.h.b16 %v139
  %v519 = vunpack.c.l.b16 %v140
  %v520 = vunpack.c.h.b16 %v140
  %v521 = vunpack.c.l.b16 %v141
  %v522 = vunpack.c.h.b16 %v141
  %v523 = vunpack.c.l.b16 %v142
  %v524 = vunpack.c.h.b16 %v142
  %v525 = vunpack.c.l.b16 %v143
  %v526 = vunpack.c.h.b16 %v143
  %v527 = vunpack.c.l.b16 %v144
  %v528 = vunpack.c.h.b16 %v144
  %v529 = vunpack.c.l.b16 %v145
  %v530 = vunpack.c.h.b16 %v145
  %v531 = vunpack.c.l.b16 %v146
  %v532 = vunpack.c.h.b16 %v146
  %v533 = vunpack.c.l.b16 %v147
  %v534 = vunpack.c.h.b16 %v147
  %v535 = vunpack.c.l.b16 %v148
  %v536 = vunpack.c.h.b16 %v148
  %v537 = vunpack.c.l.b16 %v149
  %v538 = vunpack.c.h.b16 %v149
  %v539 = vunpack.c.l.b16 %v150
  %v540 = vunpack.c.h.b16 %v150
  %v541 = vunpack.c.l.b16 %v151
  %v542 = vunpack.c.h.b16 %v151
  %v543 = vunpack.c.l.b16 %v152
  %v544 = vunpack.c.h.b16 %v152
  %v545 = vunpack.c.l.b16 %v153
  %v546 = vunpack.c.h.b16 %v153
  %v547 = vunpack.c.l.b16 %v154
  %v548 = vunpack.c.h.b16 %v154
  %v549 = vunpack.c.l.b16 %v155
  %v550 = vunpack.c.h.b16 %v155
  %v551 = vunpack.c.l.b16 %v156
  %v552 = vunpack.c.h.b16 %v156
  %v553 = vunpack.c.l.b16 %v157
  %v554 = vunpack.c.h.b16 %v157
  %v555 = vunpack.c.l.b16 %v158
  %v556 = vunpack.c.h.b16 %v158
  %v557 = vunpack.c.l.b16 %v159
  %v558 = vunpack.c.h.b16 %v159
  %v559 = vunpack.c.l.b16 %v160
  %v560 = vunpack.c.h.b16 %v160
  %v561 = vunpack.c.l.b16 %v161
  %v562 = vunpack.c.h.b16 %v161
  %v563 = vunpack.c.l.b16 %v162
  %v564 = vunpack.c.h.b16 %v162
  %v565 = vunpack.c.l.b16 %v163
  %v566 = vunpack.c.h.b16 %v163
  %v567 = vunpack.c.l.b16 %v164
  %v568 = vunpack.c.h.b16 %v164
  %v569 = vunpack.c.l.b16 %v165
  %v570 = vunpack.c.h.b16 %v165
  %v571 = vunpack.c.l.b16 %v166
  %v572 = vunpack.c.h.b16 %v166
  %v573 = vpack.c.b16 %v321, %v317
  %v574 = vpack.c.b16 %v322, %v318
  %v575 = vpack.c.b16 %v323, %v319
  %v576 = vpack.c.b16 %v324, %v320
  %v577 = vpack.c.b16 %v329, %v325
  %v578 = vpack.c.b16 %v330, %v326
  %v579 = vpack.c.b16 %v331, %v327
  %v580 = vpack.c.b16 %v332, %v328
  %v581 = vpack.c.b16 %v337, %v333
  %v582 = vpack.c.b16 %v338, %v334
  %v583 = vpack.c.b16 %v339, %v335
  %v584 = vpack.c.b16 %v340, %v336
  %v585 = vpack.c.b16 %v345, %v341
  %v586 = vpack.c.b16 %v346, %v342
  %v587 = vpack.c.b16 %v347, %v343
  %v588 = vpack.c.b16 %v348, %v344
  %v589 = vpack.c.b16 %v353, %v349
  %v590 = vpack.c.b16 %v354, %v350
  %v591 = vpack.c.b16 %v355, %v351
  %v592 = vpack.c.b16 %v356, %v352
  %v593 = vpack.c.b16 %v361, %v357
  %v594 = vpack.c.b16 %v362, %v358
  %v595 = vpack.c.b16 %v363, %v359
  %v596 = vpack.c.b16 %v364, %v360
  %v597 = vpack.c.b16 %v369, %v365
  %v598 = vpack.c.b16 %v370, %v366
  %v599 = vpack.c.b16 %v371, %v367
  %v600 = vpack.c.b16 %v372, %v368
  %v601 = vpack.c.b16 %v377, %v373
  %v602 = vpack.c.b16 %v378, %v374
  %v603 = vpack.c.b16 %v379, %v375
  %v604 = vpack.c.b16 %v380, %v376
  %v605 = vpack.c.b16 %v385, %v381
  %v606 = vpack.c.b16 %v386, %v382
  %v607 = vpack.c.b16 %v387, %v383
  %v608 = vpack.c.b16 %v388, %v384
  %v609 = vpack.c.b16 %v393, %v389
  %v610 = vpack.c.b16 %v394, %v390
  %v611 = vpack.c.b16 %v395, %v391
  %v612 = vpack.c.b16 %v396, %v392
  %v613 = vpack.c.b16 %v401, %v397
  %v614 = vpack.c.b16 %v402, %v398
  %v615 = vpack.c.b16 %v403, %v399
  %v616 = vpack.c.b16 %v404, %v400
  %v617 = vpack.c.b16 %v409, %v405
  %v618 = vpack.c.b16 %v410, %v406
  %v619 = vpack.c.b16 %v411, %v407
  %v620 = vpack.c.b16 %v412, %v408
  %v621 = vpack.c.b16 %v417, %v413
  %v622 = vpack.c.b16 %v418, %v414
  %v623 = vpack.c.b16 %v419, %v415
  %v624 = vpack.c.b16 %v420, %v416
  %v625 = vpack.c.b16 %v425, %v421
  %v626 = vpack.c.b16 %v426, %v422
  %v627 = vpack.c.b16 %v427, %v423
  %v628 = vpack.c.b16 %v428, %v424
  %v629 = vpack.c.b16 %v433, %v429
  %v630 = vpack.c.b16 %v434, %v430
  %v631 = vpack.c.b16 %v435, %v431
  %v632 = vpack.c.b16 %v436, %v432
  %v633 = vpack.c.b16 %v441, %v437
  %v634 = vpack.c.b16 %v442, %v438
  %v635 = vpack.c.b16 %v443, %v439
  %v636 = vpack.c.b16 %v444, %v440
  %v637 = vpack.c.b16 %v449, %v445
  %v638 = vpack.c.b16 %v450, %v446
  %v639 = vpack.c.b16 %v451, %v447
  %v640 = vpack.c.b16 %v452, %v448
  %v641 = vpack.c.b16 %v457, %v453
  %v642 = vpack.c.b16 %v458, %v454
  %v643 = vpack.c.b16 %v459, %v455
  %v644 = vpack.c.b16 %v460, %v456
  %v645 = vpack.c.b16 %v465, %v461
  %v646 = vpack.c.b16 %v466, %v462
  %v647 = vpack.c.b16 %v467, %v463
  %v648 = vpack.c.b16 %v468, %v464
  %v649 = vpack.c.b16 %v473, %v469
  %v650 = vpack.c.b16 %v474, %v470
  %v651 = vpack.c.b16 %v475, %v471
  %v652 = vpack.c.b16 %v476, %v472
  %v653 = vpack.c.b16 %v481, %v477
  %v654 = vpack.c.b16 %v482, %v478
  %v655 = vpack.c.b16 %v483, %v479
  %v656 = vpack.c.b16 %v484, %v480
  %v657 = vpack.c.b16 %v489, %v485
  %v658 = vpack.c.b16 %v490, %v486
  %v659 = vpack.c.b16 %v491, %v487
  %v660 = vpack.c.b16 %v492, %v488
  %v661 = vpack.c.b16 %v497, %v493
  %v662 = vpack.c.b16 %v498, %v494
  %v663 = vpack.c.b16 %v499, %v495
  %v664 = vpack.c.b16 %v500, %v496
  %v665 = vpack.c.b16 %v505, %v501
  %v666 = vpack.c.b16 %v506, %v502
  %v667 = vpack.c.b16 %v507, %v503
  %v668 = vpack.c.b16 %v508, %v504
  %v669 = vpack.c.b16 %v513, %v509
  %v670 = vpack.c.b16 %v514, %v510
  %v671 = vpack.c.b16 %v515, %v511
  %v672 = vpack.c.b16 %v516, %v512
  %v673 = vpack.c.b16 %v521, %v517
  %v674 = vpack.c.b16 %v522, %v518
  %v675 = vpack.c.b16 %v523, %v519
  %v676 = vpack.c.b16 %v524, %v520
  %v677 = vpack.c.b16 %v529, %v525
  %v678 = vpack.c.b16 %v530, %v526
  %v679 = vpack.c.b16 %v531, %v527
  %v680 = vpack.c.b16 %v532, %v528
  %v681 = vpack.c.b16 %v537, %v533
  %v682 = vpack.c.b16 %v538, %v534
  %v683 = vpack.c.b16 %v539, %v535
  %v684 = vpack.c.b16 %v540, %v536
  %v685 = vpack.c.b16 %v545, %v541
  %v686 = vpack.c.b16 %v546, %v542
  %v687 = vpack.c.b16 %v547, %v543
  %v688 = vpack.c.b16 %v548, %v544
  %v689 = vpack.c.b16 %v553, %v549
  %v690 = vpack.c.b16 %v554, %v550
  %v691 = vpack.c.b16 %v555, %v551
  %v692 = vpack.c.b16 %v556, %v552
  %v693 = vpack.c.b16 %v561, %v557
  %v694 = vpack.c.b16 %v562, %v558
  %v695 = vpack.c.b16 %v563, %v559
  %v696 = vpack.c.b16 %v564, %v560
  %v697 = vpack.c.b16 %v569, %v565
  %v698 = vpack.c.b16 %v570, %v566
  %v699 = vpack.c.b16 %v571, %v567
  %v700 = vpack.c.b16 %v572, %v568
  %829 = vmatprep.subr.bf16.mxu0 %v574
  %830 = vmatpush1.bf16.msra.mxu0 %v573
  %831 = vmatprep.subr.bf16.mxu0 %v578
  %832 = vmatpush1.bf16.msra.mxu0 %v577
  %833 = vmatprep.subr.bf16.mxu0 %v582
  %834 = vmatpush1.bf16.msra.mxu0 %v581
  %835 = vmatprep.subr.bf16.mxu0 %v586
  %836 = vmatpush1.bf16.msra.mxu0 %v585
  %837 = vmatprep.subr.bf16.mxu0 %v590
  %838 = vmatpush1.bf16.msra.mxu0 %v589
  %839 = vmatprep.subr.bf16.mxu0 %v594
  %840 = vmatpush1.bf16.msra.mxu0 %v593
  %841 = vmatprep.subr.bf16.mxu0 %v598
  %842 = vmatpush1.bf16.msra.mxu0 %v597
  %843 = vmatprep.subr.bf16.mxu0 %v602
  %844 = vmatpush1.bf16.msra.mxu0 %v601
  %845 = vmatprep.subr.bf16.mxu0 %v606
  %846 = vmatpush1.bf16.msra.mxu0 %v605
  %847 = vmatprep.subr.bf16.mxu0 %v610
  %848 = vmatpush1.bf16.msra.mxu0 %v609
  %849 = vmatprep.subr.bf16.mxu0 %v614
  %850 = vmatpush1.bf16.msra.mxu0 %v613
  %851 = vmatprep.subr.bf16.mxu0 %v618
  %852 = vmatpush1.bf16.msra.mxu0 %v617
  %853 = vmatprep.subr.bf16.mxu0 %v622
  %854 = vmatpush1.bf16.msra.mxu0 %v621
  %855 = vmatprep.subr.bf16.mxu0 %v626
  %856 = vmatpush1.bf16.msra.mxu0 %v625
  %857 = vmatprep.subr.bf16.mxu0 %v630
  %858 = vmatpush1.bf16.msra.mxu0 %v629
  %859 = vmatprep.subr.bf16.mxu0 %v634
  %860 = vmatpush1.bf16.msra.mxu0 %v633
  %861 = vmatprep.mubr.bf16.mxu0 %v36
  %862 = vmatmul.mubr.bf16.gmra.mrb[0].mxu0 %v35
  %v863 = vpop.f32.mrb[0].mxu0
  %v864 = vadd.f32 %v172, %v863
  %v865 = vpop.f32.mrb[0].mxu0
  %v866 = vadd.f32 %v176, %v865
  %v867 = vpop.f32.mrb[0].mxu0
  %v868 = vpop.f32.mrb[0].mxu0
  %869 = vdwg.mxu0
  %870 = vmatprep.subr.bf16.mxu0 %v638
  %871 = vmatpush1.bf16.msra.mxu0 %v637
  %872 = vmatprep.subr.bf16.mxu0 %v642
  %873 = vmatpush1.bf16.msra.mxu0 %v641
  %874 = vmatprep.subr.bf16.mxu0 %v646
  %875 = vmatpush1.bf16.msra.mxu0 %v645
  %876 = vmatprep.subr.bf16.mxu0 %v650
  %877 = vmatpush1.bf16.msra.mxu0 %v649
  %878 = vmatprep.subr.bf16.mxu0 %v654
  %879 = vmatpush1.bf16.msra.mxu0 %v653
  %880 = vmatprep.subr.bf16.mxu0 %v658
  %881 = vmatpush1.bf16.msra.mxu0 %v657
  %882 = vmatprep.subr.bf16.mxu0 %v662
  %883 = vmatpush1.bf16.msra.mxu0 %v661
  %884 = vmatprep.subr.bf16.mxu0 %v666
  %885 = vmatpush1.bf16.msra.mxu0 %v665
  %886 = vmatprep.subr.bf16.mxu0 %v670
  %887 = vmatpush1.bf16.msra.mxu0 %v669
  %888 = vmatprep.subr.bf16.mxu0 %v674
  %889 = vmatpush1.bf16.msra.mxu0 %v673
  %890 = vmatprep.subr.bf16.mxu0 %v678
  %891 = vmatpush1.bf16.msra.mxu0 %v677
  %892 = vmatprep.subr.bf16.mxu0 %v682
  %893 = vmatpush1.bf16.msra.mxu0 %v681
  %894 = vmatprep.subr.bf16.mxu0 %v686
  %895 = vmatpush1.bf16.msra.mxu0 %v685
  %896 = vmatprep.subr.bf16.mxu0 %v690
  %897 = vmatpush1.bf16.msra.mxu0 %v689
  %898 = vmatprep.subr.bf16.mxu0 %v694
  %899 = vmatpush1.bf16.msra.mxu0 %v693
  %900 = vmatprep.subr.bf16.mxu0 %v698
  %901 = vmatpush1.bf16.msra.mxu0 %v697
  %902 = vmatprep.mubr.bf16.mxu0 %v38
  %903 = vmatmul.mubr.bf16.gmra.mrb[0].mxu0 %v37
  %v904 = vpop.f32.mrb[0].mxu0
  %v905 = vadd.f32 %v864, %v904
  %v906 = vpop.f32.mrb[0].mxu0
  %v907 = vadd.f32 %v866, %v906
  %v908 = vpop.f32.mrb[0].mxu0
  %v909 = vpop.f32.mrb[0].mxu0
  %910 = vdwg.mxu0
  %911 = vmatprep.subr.bf16.mxu0 %v576
  %912 = vmatpush1.bf16.msra.mxu0 %v575
  %913 = vmatprep.subr.bf16.mxu0 %v580
  %914 = vmatpush1.bf16.msra.mxu0 %v579
  %915 = vmatprep.subr.bf16.mxu0 %v584
  %916 = vmatpush1.bf16.msra.mxu0 %v583
  %917 = vmatprep.subr.bf16.mxu0 %v588
  %918 = vmatpush1.bf16.msra.mxu0 %v587
  %919 = vmatprep.subr.bf16.mxu0 %v592
  %920 = vmatpush1.bf16.msra.mxu0 %v591
  %921 = vmatprep.subr.bf16.mxu0 %v596
  %922 = vmatpush1.bf16.msra.mxu0 %v595
  %923 = vmatprep.subr.bf16.mxu0 %v600
  %924 = vmatpush1.bf16.msra.mxu0 %v599
  %925 = vmatprep.subr.bf16.mxu0 %v604
  %926 = vmatpush1.bf16.msra.mxu0 %v603
  %927 = vmatprep.subr.bf16.mxu0 %v608
  %928 = vmatpush1.bf16.msra.mxu0 %v607
  %929 = vmatprep.subr.bf16.mxu0 %v612
  %930 = vmatpush1.bf16.msra.mxu0 %v611
  %931 = vmatprep.subr.bf16.mxu0 %v616
  %932 = vmatpush1.bf16.msra.mxu0 %v615
  %933 = vmatprep.subr.bf16.mxu0 %v620
  %934 = vmatpush1.bf16.msra.mxu0 %v619
  %935 = vmatprep.subr.bf16.mxu0 %v624
  %936 = vmatpush1.bf16.msra.mxu0 %v623
  %937 = vmatprep.subr.bf16.mxu0 %v628
  %938 = vmatpush1.bf16.msra.mxu0 %v627
  %939 = vmatprep.subr.bf16.mxu0 %v632
  %940 = vmatpush1.bf16.msra.mxu0 %v631
  %941 = vmatprep.subr.bf16.mxu0 %v636
  %942 = vmatpush1.bf16.msra.mxu0 %v635
  %943 = vmatprep.mubr.bf16.mxu0 %v36
  %944 = vmatmul.mubr.bf16.gmra.mrb[0].mxu0 %v35
  %v945 = vpop.f32.mrb[0].mxu0
  %v946 = vadd.f32 %v180, %v945
  %v947 = vpop.f32.mrb[0].mxu0
  %v948 = vadd.f32 %v184, %v947
  %v949 = vpop.f32.mrb[0].mxu0
  %v950 = vpop.f32.mrb[0].mxu0
  %951 = vdwg.mxu0
  %952 = vmatprep.subr.bf16.mxu0 %v640
  %953 = vmatpush1.bf16.msra.mxu0 %v639
  %954 = vmatprep.subr.bf16.mxu0 %v644
  %955 = vmatpush1.bf16.msra.mxu0 %v643
  %956 = vmatprep.subr.bf16.mxu0 %v648
  %957 = vmatpush1.bf16.msra.mxu0 %v647
  %958 = vmatprep.subr.bf16.mxu0 %v652
  %959 = vmatpush1.bf16.msra.mxu0 %v651
  %960 = vmatprep.subr.bf16.mxu0 %v656
  %961 = vmatpush1.bf16.msra.mxu0 %v655
  %962 = vmatprep.subr.bf16.mxu0 %v660
  %963 = vmatpush1.bf16.msra.mxu0 %v659
  %964 = vmatprep.subr.bf16.mxu0 %v664
  %965 = vmatpush1.bf16.msra.mxu0 %v663
  %966 = vmatprep.subr.bf16.mxu0 %v668
  %967 = vmatpush1.bf16.msra.mxu0 %v667
  %968 = vmatprep.subr.bf16.mxu0 %v672
  %969 = vmatpush1.bf16.msra.mxu0 %v671
  %970 = vmatprep.subr.bf16.mxu0 %v676
  %971 = vmatpush1.bf16.msra.mxu0 %v675
  %972 = vmatprep.subr.bf16.mxu0 %v680
  %973 = vmatpush1.bf16.msra.mxu0 %v679
  %974 = vmatprep.subr.bf16.mxu0 %v684
  %975 = vmatpush1.bf16.msra.mxu0 %v683
  %976 = vmatprep.subr.bf16.mxu0 %v688
  %977 = vmatpush1.bf16.msra.mxu0 %v687
  %978 = vmatprep.subr.bf16.mxu0 %v692
  %979 = vmatpush1.bf16.msra.mxu0 %v691
  %980 = vmatprep.subr.bf16.mxu0 %v696
  %981 = vmatpush1.bf16.msra.mxu0 %v695
  %982 = vmatprep.subr.bf16.mxu0 %v700
  %983 = vmatpush1.bf16.msra.mxu0 %v699
  %984 = vmatprep.mubr.bf16.mxu0 %v38
  %985 = vmatmul.mubr.bf16.gmra.mrb[0].mxu0 %v37
  %v986 = vpop.f32.mrb[0].mxu0
  %v987 = vadd.f32 %v946, %v986
  %v988 = vpop.f32.mrb[0].mxu0
  %v989 = vadd.f32 %v948, %v988
  %v990 = vpop.f32.mrb[0].mxu0
  %v991 = vpop.f32.mrb[0].mxu0
  %992 = vdwg.mxu0
  %v993 = vadd.f32 %v905, %v31
  %v994 = vadd.f32 %v907, %v32
  %v995 = vadd.f32 %v987, %v33
  %v996 = vadd.f32 %v989, %v34
  %v997 = vadd.f32 %v993, %v994
  %v998 = vadd.f32 %v997, %v995
  %v999 = vadd.f32 %v998, %v996
  %1000 = vadd.xlane.f32.xlu0 %v999
  %v1001 = vpop.xlane.xlu0 %1000
  %v1002 = vrcp.pop 512.0
  %v1003 = vmul.f32 %v1001, %v1002
  %v1004 = vsub.f32 %v993, %v1003
  %v1005 = vsub.f32 %v994, %v1003
  %v1006 = vsub.f32 %v995, %v1003
  %v1007 = vsub.f32 %v996, %v1003
  %v1008 = vmul.f32 %v1004, %v1004
  %v1009 = vmul.f32 %v1005, %v1005
  %v1010 = vmul.f32 %v1006, %v1006
  %v1011 = vmul.f32 %v1007, %v1007
  %v1012 = vadd.f32 %v1008, %v1009
  %v1013 = vadd.f32 %v1012, %v1010
  %v1014 = vadd.f32 %v1013, %v1011
  %1015 = vadd.xlane.f32.xlu0 %v1014
  %v1016 = vpop.xlane.xlu0 %1015
  %v1017 = vmul.f32 %v1016, 0.0019569471
  %v1018 = vrsqrt.pop %v1017
  %v1019 = vmul.f32 %v1004, %v1018
  %v1020 = vmul.f32 %v1005, %v1018
  %v1021 = vmul.f32 %v1006, %v1018
  %v1022 = vmul.f32 %v1007, %v1018
  %v1023 = vld [vmem:[%s3] sm:$0xf]
  %v1024 = vadd.f32 %v1023, 1.0
  %v1026 = vlaneseq
  %v1027 = vshrl.u32 %v1026, 7
  %v1028 = vsub.s32 0, %v1027
  %v1029 = vrot.slane %v1024, %v1028
  %v1030 = vlaneseq
  %v1031 = vshrl.u32 %v1030, 7
  %v1032 = vsub.s32 1, %v1031
  %v1033 = vrot.slane %v1024, %v1032
  %v1034 = vlaneseq
  %v1035 = vshrl.u32 %v1034, 7
  %v1036 = vsub.s32 2, %v1035
  %v1037 = vrot.slane %v1024, %v1036
  %v1038 = vlaneseq
  %v1039 = vshrl.u32 %v1038, 7
  %v1040 = vsub.s32 3, %v1039
  %v1041 = vrot.slane %v1024, %v1040
  %v1046 = vmul.f32 %v1029, %v1019
  %v1047 = vmul.f32 %v1033, %v1020
  %v1048 = vmul.f32 %v1037, %v1021
  %v1049 = vmul.f32 %v1041, %v1022
  %v1050 = vld [vmem:[%s4] sm:$0xf]
  %v1052 = vlaneseq
  %v1053 = vshrl.u32 %v1052, 7
  %v1054 = vsub.s32 0, %v1053
  %v1055 = vrot.slane %v1050, %v1054
  %v1056 = vlaneseq
  %v1057 = vshrl.u32 %v1056, 7
  %v1058 = vsub.s32 1, %v1057
  %v1059 = vrot.slane %v1050, %v1058
  %v1060 = vlaneseq
  %v1061 = vshrl.u32 %v1060, 7
  %v1062 = vsub.s32 2, %v1061
  %v1063 = vrot.slane %v1050, %v1062
  %v1064 = vlaneseq
  %v1065 = vshrl.u32 %v1064, 7
  %v1066 = vsub.s32 3, %v1065
  %v1067 = vrot.slane %v1050, %v1066
  %v1072 = vadd.f32 %v1046, %v1055
  %v1073 = vadd.f32 %v1047, %v1059
  %v1074 = vadd.f32 %v1048, %v1063
  %v1075 = vadd.f32 %v1049, %v1067
  %vm1076 = vcmp.gt.f32.partialorder %v1072, 0.0
  %vm1077 = vcmp.gt.f32.partialorder %v1073, 0.0
  %vm1078 = vcmp.gt.f32.partialorder %v1074, 0.0
  %vm1079 = vcmp.gt.f32.partialorder %v1075, 0.0
  %v1080 = vmul.f32 %v1072, 0.01
  %v1081 = vmul.f32 %v1073, 0.01
  %v1082 = vmul.f32 %v1074, 0.01
  %v1083 = vmul.f32 %v1075, 0.01
  %v1084 = vsel %vm1076, %v1072, %v1080
  %v1085 = vsel %vm1077, %v1073, %v1081
  %v1086 = vsel %vm1078, %v1074, %v1082
  %v1087 = vsel %vm1079, %v1075, %v1083
  %v1088 = vpack.c.bf16 %v1084, %v1084
  %v1089 = vpack.c.bf16 %v1085, %v1085
  %v1090 = vpack.c.bf16 %v1086, %v1086
  %v1091 = vpack.c.bf16 %v1087, %v1087
  %v1092 = vld [vmem:[%s5] sm:$0xf]
  %v1093 = vld [vmem:[%s5 + $0x4] sm:$0xf]
  %v1094 = vld [vmem:[%s5 + $0x8] sm:$0xf]
  %v1095 = vld [vmem:[%s5 + $0xc] sm:$0xf]
  %v1096 = vld [vmem:[%s5 + $0x10] sm:$0xf]
  %v1097 = vld [vmem:[%s5 + $0x14] sm:$0xf]
  %v1098 = vld [vmem:[%s5 + $0x18] sm:$0xf]
  %v1099 = vld [vmem:[%s5 + $0x1c] sm:$0xf]
  %v1100 = vld [vmem:[%s5 + $0x20] sm:$0xf]
  %v1101 = vld [vmem:[%s5 + $0x24] sm:$0xf]
  %v1102 = vld [vmem:[%s5 + $0x28] sm:$0xf]
  %v1103 = vld [vmem:[%s5 + $0x2c] sm:$0xf]
  %v1104 = vld [vmem:[%s5 + $0x30] sm:$0xf]
  %v1105 = vld [vmem:[%s5 + $0x34] sm:$0xf]
  %v1106 = vld [vmem:[%s5 + $0x38] sm:$0xf]
  %v1107 = vld [vmem:[%s5 + $0x3c] sm:$0xf]
  %v1108 = vld [vmem:[%s5 + $0x40] sm:$0xf]
  %v1109 = vld [vmem:[%s5 + $0x44] sm:$0xf]
  %v1110 = vld [vmem:[%s5 + $0x48] sm:$0xf]
  %v1111 = vld [vmem:[%s5 + $0x4c] sm:$0xf]
  %v1112 = vld [vmem:[%s5 + $0x50] sm:$0xf]
  %v1113 = vld [vmem:[%s5 + $0x54] sm:$0xf]
  %v1114 = vld [vmem:[%s5 + $0x58] sm:$0xf]
  %v1115 = vld [vmem:[%s5 + $0x5c] sm:$0xf]
  %v1116 = vld [vmem:[%s5 + $0x60] sm:$0xf]
  %v1117 = vld [vmem:[%s5 + $0x64] sm:$0xf]
  %v1118 = vld [vmem:[%s5 + $0x68] sm:$0xf]
  %v1119 = vld [vmem:[%s5 + $0x6c] sm:$0xf]
  %v1120 = vld [vmem:[%s5 + $0x70] sm:$0xf]
  %v1121 = vld [vmem:[%s5 + $0x74] sm:$0xf]
  %v1122 = vld [vmem:[%s5 + $0x78] sm:$0xf]
  %v1123 = vld [vmem:[%s5 + $0x7c] sm:$0xf]
  %v1124 = vld [vmem:[%s5 + $0x80] sm:$0xf]
  %v1125 = vld [vmem:[%s5 + $0x84] sm:$0xf]
  %v1126 = vld [vmem:[%s5 + $0x88] sm:$0xf]
  %v1127 = vld [vmem:[%s5 + $0x8c] sm:$0xf]
  %v1128 = vld [vmem:[%s5 + $0x90] sm:$0xf]
  %v1129 = vld [vmem:[%s5 + $0x94] sm:$0xf]
  %v1130 = vld [vmem:[%s5 + $0x98] sm:$0xf]
  %v1131 = vld [vmem:[%s5 + $0x9c] sm:$0xf]
  %v1132 = vld [vmem:[%s5 + $0xa0] sm:$0xf]
  %v1133 = vld [vmem:[%s5 + $0xa4] sm:$0xf]
  %v1134 = vld [vmem:[%s5 + $0xa8] sm:$0xf]
  %v1135 = vld [vmem:[%s5 + $0xac] sm:$0xf]
  %v1136 = vld [vmem:[%s5 + $0xb0] sm:$0xf]
  %v1137 = vld [vmem:[%s5 + $0xb4] sm:$0xf]
  %v1138 = vld [vmem:[%s5 + $0xb8] sm:$0xf]
  %v1139 = vld [vmem:[%s5 + $0xbc] sm:$0xf]
  %v1140 = vld [vmem:[%s5 + $0xc0] sm:$0xf]
  %v1141 = vld [vmem:[%s5 + $0xc4] sm:$0xf]
  %v1142 = vld [vmem:[%s5 + $0xc8] sm:$0xf]
  %v1143 = vld [vmem:[%s5 + $0xcc] sm:$0xf]
  %v1144 = vld [vmem:[%s5 + $0xd0] sm:$0xf]
  %v1145 = vld [vmem:[%s5 + $0xd4] sm:$0xf]
  %v1146 = vld [vmem:[%s5 + $0xd8] sm:$0xf]
  %v1147 = vld [vmem:[%s5 + $0xdc] sm:$0xf]
  %v1148 = vld [vmem:[%s5 + $0xe0] sm:$0xf]
  %v1149 = vld [vmem:[%s5 + $0xe4] sm:$0xf]
  %v1150 = vld [vmem:[%s5 + $0xe8] sm:$0xf]
  %v1151 = vld [vmem:[%s5 + $0xec] sm:$0xf]
  %v1152 = vld [vmem:[%s5 + $0xf0] sm:$0xf]
  %v1153 = vld [vmem:[%s5 + $0xf4] sm:$0xf]
  %v1154 = vld [vmem:[%s5 + $0xf8] sm:$0xf]
  %v1155 = vld [vmem:[%s5 + $0xfc] sm:$0xf]
  %v1156 = vld [vmem:[%s6] sm:$0x1]
  %v1158 = vlaneseq
  %v1159 = vshrl.u32 %v1158, 7
  %v1160 = vsub.s32 0, %v1159
  %v1161 = vrot.slane %v1156, %v1160
  %v1227 = vunpack.c.l.b16 %v1092
  %v1228 = vunpack.c.l.b16 %v1093
  %v1229 = vunpack.c.l.b16 %v1094
  %v1230 = vunpack.c.l.b16 %v1095
  %v1231 = vunpack.c.l.b16 %v1096
  %v1232 = vunpack.c.l.b16 %v1097
  %v1233 = vunpack.c.l.b16 %v1098
  %v1234 = vunpack.c.l.b16 %v1099
  %v1235 = vunpack.c.l.b16 %v1100
  %v1236 = vunpack.c.l.b16 %v1101
  %v1237 = vunpack.c.l.b16 %v1102
  %v1238 = vunpack.c.l.b16 %v1103
  %v1239 = vunpack.c.l.b16 %v1104
  %v1240 = vunpack.c.l.b16 %v1105
  %v1241 = vunpack.c.l.b16 %v1106
  %v1242 = vunpack.c.l.b16 %v1107
  %v1243 = vunpack.c.l.b16 %v1108
  %v1244 = vunpack.c.l.b16 %v1109
  %v1245 = vunpack.c.l.b16 %v1110
  %v1246 = vunpack.c.l.b16 %v1111
  %v1247 = vunpack.c.l.b16 %v1112
  %v1248 = vunpack.c.l.b16 %v1113
  %v1249 = vunpack.c.l.b16 %v1114
  %v1250 = vunpack.c.l.b16 %v1115
  %v1251 = vunpack.c.l.b16 %v1116
  %v1252 = vunpack.c.l.b16 %v1117
  %v1253 = vunpack.c.l.b16 %v1118
  %v1254 = vunpack.c.l.b16 %v1119
  %v1255 = vunpack.c.l.b16 %v1120
  %v1256 = vunpack.c.l.b16 %v1121
  %v1257 = vunpack.c.l.b16 %v1122
  %v1258 = vunpack.c.l.b16 %v1123
  %v1259 = vunpack.c.l.b16 %v1124
  %v1260 = vunpack.c.l.b16 %v1125
  %v1261 = vunpack.c.l.b16 %v1126
  %v1262 = vunpack.c.l.b16 %v1127
  %v1263 = vunpack.c.l.b16 %v1128
  %v1264 = vunpack.c.l.b16 %v1129
  %v1265 = vunpack.c.l.b16 %v1130
  %v1266 = vunpack.c.l.b16 %v1131
  %v1267 = vunpack.c.l.b16 %v1132
  %v1268 = vunpack.c.l.b16 %v1133
  %v1269 = vunpack.c.l.b16 %v1134
  %v1270 = vunpack.c.l.b16 %v1135
  %v1271 = vunpack.c.l.b16 %v1136
  %v1272 = vunpack.c.l.b16 %v1137
  %v1273 = vunpack.c.l.b16 %v1138
  %v1274 = vunpack.c.l.b16 %v1139
  %v1275 = vunpack.c.l.b16 %v1140
  %v1276 = vunpack.c.l.b16 %v1141
  %v1277 = vunpack.c.l.b16 %v1142
  %v1278 = vunpack.c.l.b16 %v1143
  %v1279 = vunpack.c.l.b16 %v1144
  %v1280 = vunpack.c.l.b16 %v1145
  %v1281 = vunpack.c.l.b16 %v1146
  %v1282 = vunpack.c.l.b16 %v1147
  %v1283 = vunpack.c.l.b16 %v1148
  %v1284 = vunpack.c.l.b16 %v1149
  %v1285 = vunpack.c.l.b16 %v1150
  %v1286 = vunpack.c.l.b16 %v1151
  %v1287 = vunpack.c.l.b16 %v1152
  %v1288 = vunpack.c.l.b16 %v1153
  %v1289 = vunpack.c.l.b16 %v1154
  %v1290 = vunpack.c.l.b16 %v1155
  %v1291 = vpack.c.b16 %v1228, %v1227
  %v1292 = vpack.c.b16 %v1230, %v1229
  %v1293 = vpack.c.b16 %v1232, %v1231
  %v1294 = vpack.c.b16 %v1234, %v1233
  %v1295 = vpack.c.b16 %v1236, %v1235
  %v1296 = vpack.c.b16 %v1238, %v1237
  %v1297 = vpack.c.b16 %v1240, %v1239
  %v1298 = vpack.c.b16 %v1242, %v1241
  %v1299 = vpack.c.b16 %v1244, %v1243
  %v1300 = vpack.c.b16 %v1246, %v1245
  %v1301 = vpack.c.b16 %v1248, %v1247
  %v1302 = vpack.c.b16 %v1250, %v1249
  %v1303 = vpack.c.b16 %v1252, %v1251
  %v1304 = vpack.c.b16 %v1254, %v1253
  %v1305 = vpack.c.b16 %v1256, %v1255
  %v1306 = vpack.c.b16 %v1258, %v1257
  %v1307 = vpack.c.b16 %v1260, %v1259
  %v1308 = vpack.c.b16 %v1262, %v1261
  %v1309 = vpack.c.b16 %v1264, %v1263
  %v1310 = vpack.c.b16 %v1266, %v1265
  %v1311 = vpack.c.b16 %v1268, %v1267
  %v1312 = vpack.c.b16 %v1270, %v1269
  %v1313 = vpack.c.b16 %v1272, %v1271
  %v1314 = vpack.c.b16 %v1274, %v1273
  %v1315 = vpack.c.b16 %v1276, %v1275
  %v1316 = vpack.c.b16 %v1278, %v1277
  %v1317 = vpack.c.b16 %v1280, %v1279
  %v1318 = vpack.c.b16 %v1282, %v1281
  %v1319 = vpack.c.b16 %v1284, %v1283
  %v1320 = vpack.c.b16 %v1286, %v1285
  %v1321 = vpack.c.b16 %v1288, %v1287
  %v1322 = vpack.c.b16 %v1290, %v1289
  %1355 = vmatprep.subr.bf16.mxu0 0
  %1356 = vmatpush1.bf16.msra.mxu0 %v1291
  %1357 = vmatprep.subr.bf16.mxu0 0
  %1358 = vmatpush1.bf16.msra.mxu0 %v1292
  %1359 = vmatprep.subr.bf16.mxu0 0
  %1360 = vmatpush1.bf16.msra.mxu0 %v1293
  %1361 = vmatprep.subr.bf16.mxu0 0
  %1362 = vmatpush1.bf16.msra.mxu0 %v1294
  %1363 = vmatprep.subr.bf16.mxu0 0
  %1364 = vmatpush1.bf16.msra.mxu0 %v1295
  %1365 = vmatprep.subr.bf16.mxu0 0
  %1366 = vmatpush1.bf16.msra.mxu0 %v1296
  %1367 = vmatprep.subr.bf16.mxu0 0
  %1368 = vmatpush1.bf16.msra.mxu0 %v1297
  %1369 = vmatprep.subr.bf16.mxu0 0
  %1370 = vmatpush1.bf16.msra.mxu0 %v1298
  %1371 = vmatprep.subr.bf16.mxu0 0
  %1372 = vmatpush1.bf16.msra.mxu0 %v1299
  %1373 = vmatprep.subr.bf16.mxu0 0
  %1374 = vmatpush1.bf16.msra.mxu0 %v1300
  %1375 = vmatprep.subr.bf16.mxu0 0
  %1376 = vmatpush1.bf16.msra.mxu0 %v1301
  %1377 = vmatprep.subr.bf16.mxu0 0
  %1378 = vmatpush1.bf16.msra.mxu0 %v1302
  %1379 = vmatprep.subr.bf16.mxu0 0
  %1380 = vmatpush1.bf16.msra.mxu0 %v1303
  %1381 = vmatprep.subr.bf16.mxu0 0
  %1382 = vmatpush1.bf16.msra.mxu0 %v1304
  %1383 = vmatprep.subr.bf16.mxu0 0
  %1384 = vmatpush1.bf16.msra.mxu0 %v1305
  %1385 = vmatprep.subr.bf16.mxu0 0
  %1386 = vmatpush1.bf16.msra.mxu0 %v1306
  %1387 = vmatprep.mubr.bf16.mxu0 %v1089
  %1388 = vmatmul.mubr.bf16.gmra.mrb[0].mxu0 %v1088
  %v1389 = vpop.f32.mrb[0].mxu0
  %v1390 = vadd.f32 %v1161, %v1389
  %v1391 = vpop.f32.mrb[0].mxu0
  %v1392 = vpop.f32.mrb[0].mxu0
  %v1393 = vpop.f32.mrb[0].mxu0
  %1394 = vdwg.mxu0
  %1395 = vmatprep.subr.bf16.mxu0 0
  %1396 = vmatpush1.bf16.msra.mxu0 %v1307
  %1397 = vmatprep.subr.bf16.mxu0 0
  %1398 = vmatpush1.bf16.msra.mxu0 %v1308
  %1399 = vmatprep.subr.bf16.mxu0 0
  %1400 = vmatpush1.bf16.msra.mxu0 %v1309
  %1401 = vmatprep.subr.bf16.mxu0 0
  %1402 = vmatpush1.bf16.msra.mxu0 %v1310
  %1403 = vmatprep.subr.bf16.mxu0 0
  %1404 = vmatpush1.bf16.msra.mxu0 %v1311
  %1405 = vmatprep.subr.bf16.mxu0 0
  %1406 = vmatpush1.bf16.msra.mxu0 %v1312
  %1407 = vmatprep.subr.bf16.mxu0 0
  %1408 = vmatpush1.bf16.msra.mxu0 %v1313
  %1409 = vmatprep.subr.bf16.mxu0 0
  %1410 = vmatpush1.bf16.msra.mxu0 %v1314
  %1411 = vmatprep.subr.bf16.mxu0 0
  %1412 = vmatpush1.bf16.msra.mxu0 %v1315
  %1413 = vmatprep.subr.bf16.mxu0 0
  %1414 = vmatpush1.bf16.msra.mxu0 %v1316
  %1415 = vmatprep.subr.bf16.mxu0 0
  %1416 = vmatpush1.bf16.msra.mxu0 %v1317
  %1417 = vmatprep.subr.bf16.mxu0 0
  %1418 = vmatpush1.bf16.msra.mxu0 %v1318
  %1419 = vmatprep.subr.bf16.mxu0 0
  %1420 = vmatpush1.bf16.msra.mxu0 %v1319
  %1421 = vmatprep.subr.bf16.mxu0 0
  %1422 = vmatpush1.bf16.msra.mxu0 %v1320
  %1423 = vmatprep.subr.bf16.mxu0 0
  %1424 = vmatpush1.bf16.msra.mxu0 %v1321
  %1425 = vmatprep.subr.bf16.mxu0 0
  %1426 = vmatpush1.bf16.msra.mxu0 %v1322
  %1427 = vmatprep.mubr.bf16.mxu0 %v1091
  %1428 = vmatmul.mubr.bf16.gmra.mrb[0].mxu0 %v1090
  %v1429 = vpop.f32.mrb[0].mxu0
  %v1430 = vadd.f32 %v1390, %v1429
  %v1431 = vpop.f32.mrb[0].mxu0
  %v1432 = vpop.f32.mrb[0].mxu0
  %v1433 = vpop.f32.mrb[0].mxu0
  %1434 = vdwg.mxu0
  %s1435 = sld [smem:[#allocation2]]
  %v1436 = vstv %s1435
  %v1437 = vadd.f32 %v1430, %v1436
  %v1438 = vxor.u32 %v1437, 2147483648
  %v1439 = vmul.f32 %v1438, 1.442695
  %v1440 = vpow.pop %v1439
  %v1441 = vadd.f32 %v1440, 1.0
  %v1442 = vrcp.pop %v1441
  %v1443 = vmul.f32 1.0, %v1442
  %vm1444 = vcmask 15360
  %1445 = vst.msk [vmem:[%s8] sm:$0xff] %vm1444, %v1443
  // Predicated region
  $region34: #{proposer_forward.1} parent=0 // pred_check
    _
  $region35: #{proposer_forward.1} parent=0 // pred_check_branch
    %1447 = sbr.rel (0) target = $region37
  $region36: #{proposer_forward.1} parent=0 // pred_region
    _
  $region37: #{proposer_forward.1} parent=0 // pred_fallthru
    _
  // Predicated region
  $region38: #{proposer_forward.1} parent=0 // pred_check
    _
  $region39: #{proposer_forward.1} parent=0 // pred_check_branch
    %1449 = sbr.rel (0) target = $region41
  $region40: #{proposer_forward.1} parent=0 // pred_region
    _
  $region41: #{proposer_forward.1} parent=0 // pred_fallthru
    _

</llo_original>
